<compile_context>
chip_gen: v7x
topology: tpu7x:2x2x1
jax: 0.10.0
libtpu: 0.0.40
codegen_flags: <defaults>
</compile_context>

<pallas_src>
import functools

import jax
import jax.numpy as jnp
from jax.experimental import pallas as pl
from jax.experimental.pallas import tpu as pltpu

_LANE = 128     # TPU vreg lane width (last dim)
_SUBLANE = 8    # f32 sublane count (second-to-last dim)


def _round_up(x, m):
    return ((x + m - 1) // m) * m


def _vmem_capacity_bytes():
    """Per-core VMEM capacity; conservative 64 MiB (v7x) if the query fails."""
    try:
        return int(pltpu.get_tpu_info().vmem_capacity_bytes)
    except Exception:
        return 64 * 1024 * 1024


def _largest_aligned_divisor(total, target):
    """Largest multiple-of-128 divisor of `total` (a multiple of 128) <= target."""
    n = total // _LANE
    best = 1
    for d in range(1, n + 1):
        if n % d == 0 and d * _LANE <= target:
            best = d
    return best * _LANE


# ---------------------------------------------------------------------------
# Probe: does this build honour pl.Buffered(1) on a top-level pallas_call spec?
# ---------------------------------------------------------------------------
_SINGLE_BUFFER_OK = None


def _probe_kernel(x_ref, o_ref):
    o_ref[...] = x_ref[...] + 1.0


def _single_buffer_supported():
    global _SINGLE_BUFFER_OK
    if _SINGLE_BUFFER_OK is None:
        try:
            fn = pl.pallas_call(
                _probe_kernel,
                out_shape=jax.ShapeDtypeStruct((2 * _SUBLANE, _LANE), jnp.float32),
                grid=(2,),
                in_specs=[pl.BlockSpec((_SUBLANE, _LANE), lambda i: (0, 0),
                                       pipeline_mode=pl.Buffered(1))],
                out_specs=pl.BlockSpec((_SUBLANE, _LANE), lambda i: (i, 0)),
            )
            jax.block_until_ready(fn(jnp.zeros((_SUBLANE, _LANE), jnp.float32)))
            _SINGLE_BUFFER_OK = True
        except Exception:
            _SINGLE_BUFFER_OK = False
    return _SINGLE_BUFFER_OK


# ---------------------------------------------------------------------------
# Kernel
# ---------------------------------------------------------------------------
def _mlp_kernel(x_ref, w1t_ref, b1_ref, w2t_ref, b2_ref, *refs,
                store_embed, multi_k):
    if multi_k:
        acc_ref = refs[-1]
        out_refs = refs[:-1]
    else:
        out_refs = refs
    out_ref = out_refs[0]

    # layer1 + ReLU on the current hidden slice (full hidden when multi_k=False).
    # Weights are pre-transposed -> natural (M,K)x(K,N); no in-kernel XLU transpose.
    h = jnp.dot(x_ref[...], w1t_ref[...], preferred_element_type=jnp.float32)
    h = jnp.maximum(h + b1_ref[...], 0.0)          # bias-add / ReLU in f32
    if store_embed:
        out_refs[1][...] = h.astype(out_refs[1].dtype)

    # fc (partial contraction over this hidden slice).
    part = jnp.dot(h.astype(w2t_ref.dtype), w2t_ref[...],
                   preferred_element_type=jnp.float32)

    if multi_k:
        k = pl.program_id(1)

        @pl.when(k == 0)
        def _():
            acc_ref[...] = jnp.zeros_like(acc_ref)

        acc_ref[...] += part

        @pl.when(k == pl.num_programs(1) - 1)
        def _():
            out_ref[...] = (acc_ref[...] + b2_ref[...]).astype(out_ref.dtype)
    else:
        out_ref[...] = (part + b2_ref[...]).astype(out_ref.dtype)


# ---------------------------------------------------------------------------
# Tiling / VMEM budgeting (all static Python, runs at trace time)
# ---------------------------------------------------------------------------
def _choose_tiling(b_sub, in_p, hid_p, out_p, x_iz, w_iz, out_iz, embed_iz,
                   return_embedding, batch_block, hidden_block):
    vmem_cap = _vmem_capacity_bytes()
    budget = (3 * vmem_cap) // 4            # leave headroom for compiler scratch

    full_w = (in_p * hid_p + hid_p * out_p) * w_iz \
             + _SUBLANE * (hid_p + out_p) * 4            # + sublane-padded biases

    # ----- hidden (K) tile ---------------------------------------------------
    if hidden_block is not None:
        tk = _largest_aligned_divisor(hid_p, max(hidden_block, _LANE))
    elif full_w <= budget // 2:
        tk = hid_p                                       # weights fully VMEM-resident
    else:
        tk = _largest_aligned_divisor(hid_p, 512)        # stream weights in K-slices
    multi_k = tk < hid_p

    if multi_k:
        # double-buffered K-slices of both weights + b1 slice + resident b2
        w_bytes = 2 * (in_p * tk + tk * out_p) * w_iz \
                  + 2 * _SUBLANE * tk * 4 + _SUBLANE * out_p * 4
    else:
        # constant-index weights, single-buffered (pl.Buffered(1))
        w_bytes = full_w

    def tile_bytes(tb):
        b = 2 * tb * in_p * x_iz              # x tile (double-buffered)
        b += 2 * tb * out_p * out_iz          # out tile (double-buffered)
        if return_embedding:
            b += 2 * tb * tk * embed_iz       # embedding tile (double-buffered)
        if multi_k:
            b += tb * out_p * 4               # f32 accumulator scratch
        return b

    # ----- batch tile ---------------------------------------------------------
    if batch_block is not None:
        tb = _round_up(batch_block, _SUBLANE)
    else:
        cap = min(b_sub, 1024)
        tb = _SUBLANE
        for cand in (8, 16, 32, 64, 128, 256, 512, 1024, cap):
            if cand <= cap and w_bytes + tile_bytes(cand) <= budget:
                tb = max(tb, cand)
        # If the whole (large) batch fits one tile, split it so the "parallel"
        # batch axis has >= 2 steps and can shard across v7x's two TensorCores.
        if tb >= b_sub and b_sub >= 128:
            tb = _round_up((b_sub + 1) // 2, _SUBLANE)

    # vmem limit: count resident weights twice (conservative in case the
    # single-buffer request is ignored), +25% headroom, clamp to device cap.
    need = w_bytes + tile_bytes(tb) + (0 if multi_k else full_w)
    vmem_limit = max(need + need // 4, 32 * 1024 * 1024)
    vmem_limit = min(vmem_limit, (9 * vmem_cap) // 10)
    return tb, tk, multi_k, int(vmem_limit)


# ---------------------------------------------------------------------------
# Forward (weights arrive already padded / transposed / cast)
# ---------------------------------------------------------------------------
@functools.partial(
    jax.jit,
    static_argnames=("num_inputs", "num_hidden", "num_outputs",
                     "return_embedding", "compute_dtype", "out_dtype",
                     "embedding_dtype", "batch_block", "hidden_block",
                     "single_buffer_weights"))
def _mlp_forward_padded(x, w1t, b1_2d, w2t, b2_2d, *, num_inputs, num_hidden,
                        num_outputs, return_embedding, compute_dtype,
                        out_dtype, embedding_dtype, batch_block, hidden_block,
                        single_buffer_weights):
    B = x.shape[0]
    in_p, hid_p = w1t.shape
    out_p = w2t.shape[1]

    x_iz = jnp.dtype(compute_dtype).itemsize
    w_iz = jnp.dtype(compute_dtype).itemsize
    out_iz = jnp.dtype(out_dtype).itemsize
    embed_iz = jnp.dtype(embedding_dtype).itemsize

    b_sub = _round_up(B, _SUBLANE)
    tb, tk, multi_k, vmem_limit = _choose_tiling(
        b_sub, in_p, hid_p, out_p, x_iz, w_iz, out_iz, embed_iz,
        return_embedding, batch_block, hidden_block)

    b_p = _round_up(b_sub, tb)
    n_b = b_p // tb
    n_k = hid_p // tk

    # Activation padding only (weights were padded once at prepare time).
    # Zero padding is exact; padded batch rows are sliced off below.
    x_p = jnp.pad(x.astype(compute_dtype),
                  ((0, b_p - B), (0, in_p - num_inputs)))

    def resident(shape, index_map):
        # Constant-index blocks never re-DMA: request a single VMEM buffer.
        if single_buffer_weights:
            return pl.BlockSpec(shape, index_map, pipeline_mode=pl.Buffered(1))
        return pl.BlockSpec(shape, index_map)

    if multi_k:
        grid = (n_b, n_k)
        in_specs = [
            pl.BlockSpec((tb, in_p), lambda i, k: (i, 0)),     # x (resident over k)
            pl.BlockSpec((in_p, tk), lambda i, k: (0, k)),     # W1.T K-slice
            pl.BlockSpec((1, tk), lambda i, k: (0, k)),        # b1 K-slice
            pl.BlockSpec((tk, out_p), lambda i, k: (k, 0)),    # W2.T K-slice
            resident((1, out_p), lambda i, k: (0, 0)),         # b2 (resident)
        ]
        out_spec_main = pl.BlockSpec((tb, out_p), lambda i, k: (i, 0))
        out_spec_embed = pl.BlockSpec((tb, tk), lambda i, k: (i, k))
        scratch_shapes = [pltpu.VMEM((tb, out_p), jnp.float32)]
        dim_sem = ("parallel", "arbitrary")
    else:
        grid = (n_b,)
        in_specs = [
            pl.BlockSpec((tb, in_p), lambda i: (i, 0)),        # x: tiled over batch
            resident((in_p, hid_p), lambda i: (0, 0)),         # W1.T: VMEM resident
            resident((1, hid_p), lambda i: (0, 0)),            # b1
            resident((hid_p, out_p), lambda i: (0, 0)),        # W2.T: VMEM resident
            resident((1, out_p), lambda i: (0, 0)),            # b2
        ]
        out_spec_main = pl.BlockSpec((tb, out_p), lambda i: (i, 0))
        out_spec_embed = pl.BlockSpec((tb, hid_p), lambda i: (i, 0))
        scratch_shapes = ()
        dim_sem = ("parallel",)

    if return_embedding:
        out_shape = (jax.ShapeDtypeStruct((b_p, out_p), out_dtype),
                     jax.ShapeDtypeStruct((b_p, hid_p), embedding_dtype))
        out_specs = (out_spec_main, out_spec_embed)
    else:
        out_shape = jax.ShapeDtypeStruct((b_p, out_p), out_dtype)
        out_specs = out_spec_main

    flops = 2 * b_p * (in_p * hid_p + hid_p * out_p)
    bytes_accessed = (b_p * in_p * x_iz
                      + (in_p * hid_p + hid_p * out_p) * w_iz
                      + (hid_p + out_p) * 4
                      + b_p * out_p * out_iz
                      + (b_p * hid_p * embed_iz if return_embedding else 0))
    cost = pl.CostEstimate(flops=flops, transcendentals=0,
                           bytes_accessed=bytes_accessed)

    kernel = functools.partial(_mlp_kernel, store_embed=return_embedding,
                               multi_k=multi_k)

    result = pl.pallas_call(
        kernel,
        out_shape=out_shape,
        grid=grid,
        in_specs=in_specs,
        out_specs=out_specs,
        scratch_shapes=scratch_shapes,
        compiler_params=pltpu.CompilerParams(
            dimension_semantics=dim_sem,
            vmem_limit_bytes=vmem_limit),
        cost_estimate=cost,
    )(x_p, w1t, b1_2d, w2t, b2_2d)

    if return_embedding:
        out, embed = result
        return out[:B, :num_outputs], embed[:B, :num_hidden]
    return result[:B, :num_outputs]


# ---------------------------------------------------------------------------
# Parameter preparation (done once, outside the per-call path)
# ---------------------------------------------------------------------------
class PallasMLP:
    """MLP forward with cached, pre-transposed, lane-padded weights.

    w1: (num_hidden, num_inputs); b1: (num_hidden,);
    w2: (num_outputs, num_hidden); b2: (num_outputs,)
    """

    def __init__(self, w1, b1, w2, b2, *, compute_dtype=jnp.float32,
                 out_dtype=None, embedding_dtype=None,
                 batch_block=None, hidden_block=None):
        num_hidden, num_inputs = w1.shape
        num_outputs = w2.shape[0]
        self.num_inputs, self.num_hidden, self.num_outputs = \
            num_inputs, num_hidden, num_outputs
        self.compute_dtype = compute_dtype
        self.out_dtype = out_dtype
        self.embedding_dtype = embedding_dtype
        self.batch_block = batch_block
        self.hidden_block = hidden_block
        self._single_buffer = _single_buffer_supported()

        in_p = _round_up(num_inputs, _LANE)
        hid_p = _round_up(num_hidden, _LANE)
        out_p = _round_up(num_outputs, _LANE)

        # One-time layout work: transpose + zero-pad (+ cast) the weights here
        # instead of re-materializing them inside every forward call.
        self.w1t = jnp.pad(w1.T, ((0, in_p - num_inputs),
                                  (0, hid_p - num_hidden))).astype(compute_dtype)
        self.w2t = jnp.pad(w2.T, ((0, hid_p - num_hidden),
                                  (0, out_p - num_outputs))).astype(compute_dtype)
        # Biases stay f32: the bias-add / ReLU epilogue runs in f32.
        self.b1 = jnp.pad(b1, (0, hid_p - num_hidden)).reshape(1, hid_p).astype(jnp.float32)
        self.b2 = jnp.pad(b2, (0, out_p - num_outputs)).reshape(1, out_p).astype(jnp.float32)

    def __call__(self, x, return_embedding=False):
        out_dtype = self.out_dtype if self.out_dtype is not None else x.dtype
        embed_dtype = (self.embedding_dtype if self.embedding_dtype is not None
                       else x.dtype)
        return _mlp_forward_padded(
            x, self.w1t, self.b1, self.w2t, self.b2,
            num_inputs=self.num_inputs, num_hidden=self.num_hidden,
            num_outputs=self.num_outputs, return_embedding=return_embedding,
            compute_dtype=self.compute_dtype, out_dtype=out_dtype,
            embedding_dtype=embed_dtype, batch_block=self.batch_block,
            hidden_block=self.hidden_block,
            single_buffer_weights=self._single_buffer)


def mlp_forward(x, w1, b1, w2, b2, return_embedding=False, **kwargs):
    """One-shot convenience wrapper. For repeated calls build PallasMLP once."""
    return PallasMLP(w1, b1, w2, b2, **kwargs)(x, return_embedding=return_embedding)


if __name__ == "__main__":
    # Shapes consistent with MLP(num_inputs=32, num_hidden=64, num_outputs=16)
    batch, num_inputs, num_hidden, num_outputs = 8, 32, 64, 16

    key = jax.random.PRNGKey(0)
    kx, k1, k2, k3, k4, k5, k6 = jax.random.split(key, 7)
    x = jax.random.normal(kx, (batch, num_inputs), jnp.float32)

    # nn.Linear-style uniform(-1/sqrt(fan_in), 1/sqrt(fan_in)) init.
    bound1 = 1.0 / jnp.sqrt(num_inputs)
    bound2 = 1.0 / jnp.sqrt(num_hidden)
    w1 = jax.random.uniform(k1, (num_hidden, num_inputs), jnp.float32, -bound1, bound1)
    b1 = jax.random.uniform(k2, (num_hidden,), jnp.float32, -bound1, bound1)
    w2 = jax.random.uniform(k3, (num_outputs, num_hidden), jnp.float32, -bound2, bound2)
    b2 = jax.random.uniform(k4, (num_outputs,), jnp.float32, -bound2, bound2)

    ref_embed = jnp.maximum(x @ w1.T + b1, 0.0)
    ref_out = ref_embed @ w2.T + b2

    # 1) f32 end-to-end: matches nn.Linear numerics.
    mlp = PallasMLP(w1, b1, w2, b2)
    out, embed = mlp(x, return_embedding=True)
    out_only = mlp(x, return_embedding=False)
    jax.block_until_ready((out, embed, out_only))
    assert out.shape == (batch, num_outputs)
    assert embed.shape == (batch, num_hidden)
    assert jnp.allclose(out, ref_out, atol=1e-5, rtol=1e-5)
    assert jnp.allclose(embed, ref_embed, atol=1e-5, rtol=1e-5)
    assert jnp.allclose(out_only, ref_out, atol=1e-5, rtol=1e-5)

    # 2) bf16 matmul inputs, f32 accumulation / epilogue (perf option).
    mlp_bf16 = PallasMLP(w1, b1, w2, b2, compute_dtype=jnp.bfloat16)
    out_bf16 = jax.block_until_ready(mlp_bf16(x))
    assert jnp.allclose(out_bf16, ref_out, atol=5e-2, rtol=5e-2)

    # 3) hidden-dim (K) sliced path with f32 accumulator (used when the weights
    #    would not fit VMEM, e.g. big hidden on v7x); forced via hidden_block.
    hid_big = 256
    bound2b = 1.0 / jnp.sqrt(hid_big)
    w1b = jax.random.uniform(k5, (hid_big, num_inputs), jnp.float32, -bound1, bound1)
    b1b = jax.random.uniform(k6, (hid_big,), jnp.float32, -bound1, bound1)
    w2b = jax.random.uniform(k3, (num_outputs, hid_big), jnp.float32, -bound2b, bound2b)
    ref_embed_b = jnp.maximum(x @ w1b.T + b1b, 0.0)
    ref_out_b = ref_embed_b @ w2b.T + b2
    mlp_k = PallasMLP(w1b, b1b, w2b, b2, hidden_block=128)
    out_b, embed_b = mlp_k(x, return_embedding=True)
    jax.block_until_ready((out_b, embed_b))
    assert jnp.allclose(out_b, ref_out_b, atol=1e-4, rtol=1e-4)
    assert jnp.allclose(embed_b, ref_embed_b, atol=1e-5, rtol=1e-5)

    print("KERNEL_OK")
</pallas_src>

<mosaic_0001>
module attributes {stable_mosaic.version = 11 : i64} {
  func.func @_probe_kernel(%arg0: i32, %arg1: memref<8x128xf32, #tpu.memory_space<vmem>>, %arg2: memref<8x128xf32, #tpu.memory_space<vmem>>) attributes {dimension_semantics = [#tpu.dimension_semantics<arbitrary>], iteration_bounds = array<i64: 2>, scalar_prefetch = 0 : i64, scratch_operands = 0 : i64, tpu.core_type = #tpu.core_type<tc>, window_params = [{pipeline_mode = #tpu.pipeline_mode<synchronous>, transform_indices = @transform_0, window_bounds = array<i64: 8, 128>}, {transform_indices = @transform_1, window_bounds = array<i64: 8, 128>}]} {
    %c0 = arith.constant 0 : index
    %c0_0 = arith.constant 0 : index
    %0 = vector.load %arg1[%c0, %c0_0] : memref<8x128xf32, #tpu.memory_space<vmem>>, vector<8x128xf32>
    %cst = arith.constant 1.000000e+00 : f32
    %1 = vector.broadcast %cst : f32 to vector<8x128xf32>
    %2 = arith.addf %0, %1 : vector<8x128xf32>
    %c0_1 = arith.constant 0 : index
    %c0_2 = arith.constant 0 : index
    %3 = vector.load %arg2[%c0_1, %c0_2] : memref<8x128xf32, #tpu.memory_space<vmem>>, vector<8x128xf32>
    tpu.vector_store %arg2[%c0_1, %c0_2], %2 {strides = array<i32>} : memref<8x128xf32, #tpu.memory_space<vmem>>, vector<8x128xf32>,
    return
  }
  func.func @transform_0(%arg0: i32) -> (i32, i32) {
    %c0_i32 = arith.constant 0 : i32
    %c0_i32_0 = arith.constant 0 : i32
    %c0_i32_1 = arith.constant 0 : i32
    return %c0_i32, %c0_i32_0 : i32, i32
  }
  func.func @transform_1(%arg0: i32) -> (i32, i32) {
    %c0_i32 = arith.constant 0 : i32
    %c0_i32_0 = arith.constant 0 : i32
    return %arg0, %c0_i32 : i32, i32
  }
}

module attributes {stable_mosaic.version = 11 : i64} {
  func.func @_mlp_kernel(%arg0: i32, %arg1: memref<8x128xf32, #tpu.memory_space<vmem>>, %arg2: memref<128x128xf32, #tpu.memory_space<vmem>>, %arg3: memref<1x128xf32, #tpu.memory_space<vmem>>, %arg4: memref<128x128xf32, #tpu.memory_space<vmem>>, %arg5: memref<1x128xf32, #tpu.memory_space<vmem>>, %arg6: memref<8x128xf32, #tpu.memory_space<vmem>>, %arg7: memref<8x128xf32, #tpu.memory_space<vmem>>) attributes {dimension_semantics = [#tpu.dimension_semantics<parallel>], iteration_bounds = array<i64: 1>, scalar_prefetch = 0 : i64, scratch_operands = 0 : i64, tpu.core_type = #tpu.core_type<tc>, window_params = [{transform_indices = @transform_0, window_bounds = array<i64: 8, 128>}, {pipeline_mode = #tpu.pipeline_mode<synchronous>, transform_indices = @transform_1, window_bounds = array<i64: 128, 128>}, {pipeline_mode = #tpu.pipeline_mode<synchronous>, transform_indices = @transform_2, window_bounds = array<i64: 1, 128>}, {pipeline_mode = #tpu.pipeline_mode<synchronous>, transform_indices = @transform_3, window_bounds = array<i64: 128, 128>}, {pipeline_mode = #tpu.pipeline_mode<synchronous>, transform_indices = @transform_4, window_bounds = array<i64: 1, 128>}, {transform_indices = @transform_5, window_bounds = array<i64: 8, 128>}, {transform_indices = @transform_6, window_bounds = array<i64: 8, 128>}]} {
    %c0 = arith.constant 0 : index
    %c0_0 = arith.constant 0 : index
    %0 = vector.load %arg1[%c0, %c0_0] : memref<8x128xf32, #tpu.memory_space<vmem>>, vector<8x128xf32>
    %c0_1 = arith.constant 0 : index
    %c0_2 = arith.constant 0 : index
    %1 = vector.load %arg2[%c0_1, %c0_2] : memref<128x128xf32, #tpu.memory_space<vmem>>, vector<128x128xf32>
    %cst = arith.constant dense<0.000000e+00> : vector<8x128xf32>
    %2 = tpu.matmul %0, %1, %cst {dimension_numbers = #tpu.dot_dimension_numbers<[1], [0], [0], [1], [0, 0, 1, 1], [], []>} : vector<8x128xf32>, vector<128x128xf32>, vector<8x128xf32> -> vector<8x128xf32>
    %c0_3 = arith.constant 0 : index
    %c0_4 = arith.constant 0 : index
    %3 = vector.load %arg3[%c0_3, %c0_4] : memref<1x128xf32, #tpu.memory_space<vmem>>, vector<1x128xf32>
    %4 = vector.broadcast %3 : vector<1x128xf32> to vector<8x128xf32>
    %5 = arith.addf %2, %4 : vector<8x128xf32>
    %cst_5 = arith.constant 0.000000e+00 : f32
    %6 = vector.broadcast %cst_5 : f32 to vector<8x128xf32>
    %7 = arith.maximumf %5, %6 : vector<8x128xf32>
    %c0_6 = arith.constant 0 : index
    %c0_7 = arith.constant 0 : index
    %8 = vector.load %arg7[%c0_6, %c0_7] : memref<8x128xf32, #tpu.memory_space<vmem>>, vector<8x128xf32>
    tpu.vector_store %arg7[%c0_6, %c0_7], %7 {strides = array<i32>} : memref<8x128xf32, #tpu.memory_space<vmem>>, vector<8x128xf32>,
    %c0_8 = arith.constant 0 : index
    %c0_9 = arith.constant 0 : index
    %9 = vector.load %arg4[%c0_8, %c0_9] : memref<128x128xf32, #tpu.memory_space<vmem>>, vector<128x128xf32>
    %cst_10 = arith.constant dense<0.000000e+00> : vector<8x128xf32>
    %10 = tpu.matmul %7, %9, %cst_10 {dimension_numbers = #tpu.dot_dimension_numbers<[1], [0], [0], [1], [0, 0, 1, 1], [], []>} : vector<8x128xf32>, vector<128x128xf32>, vector<8x128xf32> -> vector<8x128xf32>
    %c0_11 = arith.constant 0 : index
    %c0_12 = arith.constant 0 : index
    %11 = vector.load %arg5[%c0_11, %c0_12] : memref<1x128xf32, #tpu.memory_space<vmem>>, vector<1x128xf32>
    %12 = vector.broadcast %11 : vector<1x128xf32> to vector<8x128xf32>
    %13 = arith.addf %10, %12 : vector<8x128xf32>
    %c0_13 = arith.constant 0 : index
    %c0_14 = arith.constant 0 : index
    %14 = vector.load %arg6[%c0_13, %c0_14] : memref<8x128xf32, #tpu.memory_space<vmem>>, vector<8x128xf32>
    tpu.vector_store %arg6[%c0_13, %c0_14], %13 {strides = array<i32>} : memref<8x128xf32, #tpu.memory_space<vmem>>, vector<8x128xf32>,
    return
  }
  func.func @transform_0(%arg0: i32) -> (i32, i32) {
    %c0_i32 = arith.constant 0 : i32
    %c0_i32_0 = arith.constant 0 : i32
    return %arg0, %c0_i32 : i32, i32
  }
  func.func @transform_1(%arg0: i32) -> (i32, i32) {
    %c0_i32 = arith.constant 0 : i32
    %c0_i32_0 = arith.constant 0 : i32
    %c0_i32_1 = arith.constant 0 : i32
    return %c0_i32, %c0_i32_0 : i32, i32
  }
  func.func @transform_2(%arg0: i32) -> (i32, i32) {
    %c0_i32 = arith.constant 0 : i32
    %c0_i32_0 = arith.constant 0 : i32
    %c0_i32_1 = arith.constant 0 : i32
    return %c0_i32, %c0_i32_0 : i32, i32
  }
  func.func @transform_3(%arg0: i32) -> (i32, i32) {
    %c0_i32 = arith.constant 0 : i32
    %c0_i32_0 = arith.constant 0 : i32
    %c0_i32_1 = arith.constant 0 : i32
    return %c0_i32, %c0_i32_0 : i32, i32
  }
  func.func @transform_4(%arg0: i32) -> (i32, i32) {
    %c0_i32 = arith.constant 0 : i32
    %c0_i32_0 = arith.constant 0 : i32
    %c0_i32_1 = arith.constant 0 : i32
    return %c0_i32, %c0_i32_0 : i32, i32
  }
  func.func @transform_5(%arg0: i32) -> (i32, i32) {
    %c0_i32 = arith.constant 0 : i32
    %c0_i32_0 = arith.constant 0 : i32
    return %arg0, %c0_i32 : i32, i32
  }
  func.func @transform_6(%arg0: i32) -> (i32, i32) {
    %c0_i32 = arith.constant 0 : i32
    %c0_i32_0 = arith.constant 0 : i32
    return %arg0, %c0_i32 : i32, i32
  }
}

</mosaic_0001>

<llo_original>
// kernel: tpu_custom_call.1
$region0: #{tpu_custom_call.1}
  #allocation0 [shape = 'u32[]', space=smem, size = 0x4, offset = 0x4, fixed_abs, tag = 'smem constant byte address 0x4 - core index']
  #allocation1 [shape = 'u32[144,128]{1,0:T(1,128)}', space=vmem, size = 0x12000, scoped, tag = 'internal scratch']
  %s0 = inlined_call_operand.hbm [shape: f32[8,128], index: 0, kind: input, shape index: {}]
  %s1 = inlined_call_operand.hbm [shape: f32[16,128], index: 1, kind: output, shape index: {}]
  %s2 = sld [smem:[#allocation0]]
  $region41: #{tpu_custom_call.1} parent=0
    _
  %s4 = ssub.s32 1, %s2
  %s5 = scalar_select 0, %s4, %s2
  $region1: #{tpu_custom_call.1} parent=0
    #allocation2 [shape = 'u8[4096]{0}', space=vmem, size = 0x1000, scoped, tag = 'input window, operand 0, single buffered']
    #allocation3 [shape = 's32[2]{0}', space=sflag, size = 0x8, scoped, tag = 'scoped memory for tpu_custom_call.1']
    #allocation4 [shape = 's32[2]{0}', space=sflag, size = 0x8, scoped, tag = 'scoped memory for tpu_custom_call.1']
    #allocation5 [shape = 'u8[8192]{0}', space=vmem, size = 0x2000, scoped, tag = 'output window, operand 0']
    %6 = vsyncpa [#allocation3], 0
    %7 = vsyncpa [#allocation4], 0
    %s8 = scalar_lea.sflag [#allocation4], 1
    %9 = vsyncpa %s8, 0
    loop: start=0, step=1, limit=4
    $region2: #{tpu_custom_call.1} parent=1 // loop_pre_header
      _
    $region3: #{tpu_custom_call.1} parent=1 // loop_header
      %s11 = sphi 0, %s15
      %p12 = scmp.ge.s32.totalorder %s11, 4
      %s19 = sphi 0, %s19
      %s21 = sphi 0, %s19
      %s22 = sphi 0, %s21
      %s36 = sphi 0, %s22
      %s42 = sphi 0, %s44
      %s45 = sphi 0, %s42
      %s46 = sphi 0, %s45
      %s62 = sphi 0, %s46
    $region4: #{tpu_custom_call.1} parent=1 // loop_header_branch
      %14 = sbr.rel (%p12) target = $region8
    $region5: #{tpu_custom_call.1} parent=1 // loop_body
      %s16 = ssub.s32 %s11, 1
      %s17 = ssub.s32 %s11, 2
      %s18 = sadd.s32 %s11, 1
      %s20 = sadd.s32 %s19, 1
      %p23 = scmp.eq.s32.totalorder %s11, 1
      %p24 = scmp.ne.s32.totalorder %s19, %s21
      %p25 = scmp.eq.s32.totalorder %s11, 0
      %p26 = por %p24, %p25
      %p27 = scmp.ne.s32.totalorder %s19, %s21
      %p28 = scmp.eq.s32.totalorder %s16, 1
      %p29 = por %p27, %p28
      %p30 = scmp.ne.s32.totalorder %s21, %s22
      %p31 = scmp.eq.s32.totalorder %s16, 0
      %p32 = por %p30, %p31
      %p33 = scmp.ne.s32.totalorder %s21, %s22
      %p34 = scmp.eq.s32.totalorder %s17, 1
      %p35 = por %p33, %p34
      %p37 = scmp.ne.s32.totalorder %s22, %s36
      %p38 = scmp.eq.s32.totalorder %s17, 0
      %p39 = por %p37, %p38
      %s40 = ssub.s32 %s11, %s18
      %p41 = scmp.eq.s32.totalorder %s40, 0
      %s43 = sadd.s32 %s42, 1
      %s44 = scalar_select %p41, %s42, %s43
      %p47 = pneg %p41
      %p48 = scmp.eq.s32.totalorder %s11, 1
      %p49 = por %p47, %p48
      %p50 = scmp.ne.s32.totalorder %s42, %s45
      %p51 = scmp.eq.s32.totalorder %s11, 0
      %p52 = por %p50, %p51
      %p53 = scmp.ne.s32.totalorder %s42, %s45
      %p54 = scmp.eq.s32.totalorder %s16, 1
      %p55 = por %p53, %p54
      %p56 = scmp.ne.s32.totalorder %s45, %s46
      %p57 = scmp.eq.s32.totalorder %s16, 0
      %p58 = por %p56, %p57
      %p59 = scmp.ne.s32.totalorder %s45, %s46
      %p60 = scmp.eq.s32.totalorder %s17, 1
      %p61 = por %p59, %p60
      %p63 = scmp.ne.s32.totalorder %s46, %s62
      %p64 = scmp.eq.s32.totalorder %s17, 0
      %p65 = por %p63, %p64
      %p66 = scmp.le.s32.totalorder 1, %s11
      %p67 = scmp.lt.s32.totalorder %s11, 3
      %p68 = pnand %p66, %p67
      %p69 = pneg %p68
      // Predicated region
      $region9: #{tpu_custom_call.1} parent=5 // pred_check
        _
      $region10: #{tpu_custom_call.1} parent=5 // pred_check_branch
        %71 = sbr.rel (%p68) target = $region12
      $region11: #{tpu_custom_call.1} parent=5 // pred_region
        %s72 = ssub.s32 %s11, 1
        // Predicated region
        $region13: #{tpu_custom_call.1} parent=11 // pred_check
          %p73 = pneg %p32
        $region14: #{tpu_custom_call.1} parent=11 // pred_check_branch
          %75 = sbr.rel (%p73) target = $region16
        $region15: #{tpu_custom_call.1} parent=11 // pred_region
          %s77 = ssub.s32 128, 128
          %78 = vsyncadd [#allocation3], %s77
          %s80 = sshll.u32 [#allocation2], 4
          %s81 = int_to_ptr.vmem [resolvable:$true] %s80
          %83 = dma.hbm_to_vmem [thread:$0]  %s0, 128, %s81, [#allocation3]
        $region16: #{tpu_custom_call.1} parent=11 // pred_fallthru
          _
      $region12: #{tpu_custom_call.1} parent=5 // pred_fallthru
        _
      %p84 = scmp.lt.s32.totalorder %s11, 2
      // Predicated region
      $region17: #{tpu_custom_call.1} parent=5 // pred_check
        %p85 = pneg %p84
      $region18: #{tpu_custom_call.1} parent=5 // pred_check_branch
        %87 = sbr.rel (%p85) target = $region20
      $region19: #{tpu_custom_call.1} parent=5 // pred_region
        _
      $region20: #{tpu_custom_call.1} parent=5 // pred_fallthru
        _
      %p88 = scmp.le.s32.totalorder 1, %s11
      %p89 = scmp.lt.s32.totalorder %s11, 3
      %p90 = pnand %p88, %p89
      %p91 = pneg %p90
      // Predicated region
      $region21: #{tpu_custom_call.1} parent=5 // pred_check
        _
      $region22: #{tpu_custom_call.1} parent=5 // pred_check_branch
        %93 = sbr.rel (%p90) target = $region24
      $region23: #{tpu_custom_call.1} parent=5 // pred_region
        %s94 = ssub.s32 %s11, 1
        // Predicated region
        $region25: #{tpu_custom_call.1} parent=23 // pred_check
          %p95 = pneg %p32
        $region26: #{tpu_custom_call.1} parent=23 // pred_check_branch
          %97 = sbr.rel (%p95) target = $region28
        $region27: #{tpu_custom_call.1} parent=23 // pred_region
          %98 = dma.done [#allocation3], 128
        $region28: #{tpu_custom_call.1} parent=23 // pred_fallthru
          _
        %p99 = pneg %p32
        %p100 = pneg %p29
        %p101 = pneg %p58
        %p102 = pneg %p55
        %s103 = sand.u32 %s45, 1
        %s104 = scalar_lea.sflag [#allocation4], %s103
        %s105 = sand.u32 %s45, 1
        %s106 = smul.addr %s105, 8
        %s107 = scalar_lea.vmem [#allocation5], %s106
        %v108 = vld [vmem:[#allocation2] sm:$0xff]
        %v109 = vadd.f32 %v108, 1.0
        %110 = vst [vmem:[%s107] sm:$0xff] %v109
        %s111 = sand.u32 %s45, 1
        %s112 = scalar_lea.sflag [#allocation4], %s111
        %s113 = sand.u32 %s45, 1
        %s114 = smul.addr %s113, 8
        %s115 = scalar_lea.vmem [#allocation5], %s114
        // Predicated region
        $region29: #{tpu_custom_call.1} parent=23 // pred_check
          %p116 = pneg %p55
        $region30: #{tpu_custom_call.1} parent=23 // pred_check_branch
          %118 = sbr.rel (%p116) target = $region32
        $region31: #{tpu_custom_call.1} parent=23 // pred_region
          %s120 = ssub.s32 128, 128
          %121 = vsyncadd %s112, %s120
          %s122 = smul.addr %s16, 128
          %s123 = scalar_lea.hbm %s1, %s122
          %s125 = sshll.u32 %s115, 4
          %s126 = int_to_ptr.vmem [resolvable:$true] %s125
          %128 = dma.vmem_to_hbm [thread:$0]  %s126, 128, %s123, %s112
        $region32: #{tpu_custom_call.1} parent=23 // pred_fallthru
          _
      $region24: #{tpu_custom_call.1} parent=5 // pred_fallthru
        _
      %p129 = scmp.le.s32.totalorder 2, %s11
      // Predicated region
      $region33: #{tpu_custom_call.1} parent=5 // pred_check
        %p130 = pneg %p129
      $region34: #{tpu_custom_call.1} parent=5 // pred_check_branch
        %132 = sbr.rel (%p130) target = $region36
      $region35: #{tpu_custom_call.1} parent=5 // pred_region
        %s133 = ssub.s32 %s11, 2
        // Predicated region
        $region37: #{tpu_custom_call.1} parent=35 // pred_check
          %p134 = pneg %p61
        $region38: #{tpu_custom_call.1} parent=35 // pred_check_branch
          %136 = sbr.rel (%p134) target = $region40
        $region39: #{tpu_custom_call.1} parent=35 // pred_region
          %s137 = sand.u32 %s46, 1
          %s138 = scalar_lea.sflag [#allocation4], %s137
          %s139 = sand.u32 %s46, 1
          %s140 = smul.addr %s139, 8
          %s141 = scalar_lea.vmem [#allocation5], %s140
          %142 = dma.done %s138, 128
        $region40: #{tpu_custom_call.1} parent=35 // pred_fallthru
          _
      $region36: #{tpu_custom_call.1} parent=5 // pred_fallthru
        _
    $region6: #{tpu_custom_call.1} parent=1 // loop_footer
      %s15 = sadd.s32 1, %s11
    $region7: #{tpu_custom_call.1} parent=1 // loop_footer_branch
      %10 = sbr.rel target = $region3
    $region8: #{tpu_custom_call.1} parent=1 // loop_exit
      _
    %143 = vsyncpa [#allocation3], 1
    %s144 = scalar_lea.sflag [#allocation3], 1
    %145 = vsyncpa %s144, 1
    %146 = vsyncpa [#allocation4], 1
    %s147 = scalar_lea.sflag [#allocation4], 1
    %148 = vsyncpa %s147, 1

// kernel: _mlp_forward_padded.1
$region0: #{_mlp_forward_padded.1}
  #allocation0 [shape = 'u32[]', space=smem, size = 0x4, offset = 0x4, fixed_abs, tag = 'smem constant byte address 0x4 - core index']
  #allocation1 [shape = 'u32[144,128]{1,0:T(1,128)}', space=vmem, size = 0x12000, scoped, tag = 'internal scratch']
  %s0 = inlined_call_operand.vmem [shape: f32[8,128], index: 0, kind: input, shape index: {}]
  %s1 = inlined_call_operand.hbm [shape: f32[128,128], index: 1, kind: input, shape index: {}]
  %s2 = inlined_call_operand.vmem [shape: f32[1,128], index: 2, kind: input, shape index: {}]
  %s3 = inlined_call_operand.hbm [shape: f32[128,128], index: 3, kind: input, shape index: {}]
  %s4 = inlined_call_operand.vmem [shape: f32[1,128], index: 4, kind: input, shape index: {}]
  %s5 = inlined_call_operand.hbm [shape: f32[8,128], index: 5, kind: output, shape index: {0}]
  %s6 = inlined_call_operand.hbm [shape: f32[8,128], index: 6, kind: output, shape index: {1}]
  %7 = xla_tuple %s5, %s6
  %s8 = sld [smem:[#allocation0]]
  $region46: #{_mlp_forward_padded.1} parent=0
    _
  %s10 = ssub.s32 1, %s8
  %s11 = scalar_select 0, %s10, %s8
  $region1: #{_mlp_forward_padded.1} parent=0
    #allocation2 [shape = 'u8[65536]{0}', space=vmem, size = 0x10000, scoped, tag = 'input window, operand 1, single buffered']
    #allocation3 [shape = 's32[1]{0}', space=sflag, size = 0x4, scoped, tag = 'scoped memory for _mlp_forward_padded.1']
    #allocation4 [shape = 's32[1]{0}', space=sflag, size = 0x4, scoped, tag = 'scoped memory for _mlp_forward_padded.1']
    #allocation5 [shape = 'u8[65536]{0}', space=vmem, size = 0x10000, scoped, tag = 'input window, operand 3, single buffered']
    #allocation6 [shape = 's32[1]{0}', space=sflag, size = 0x4, scoped, tag = 'scoped memory for _mlp_forward_padded.1']
    #allocation7 [shape = 'u8[4096]{0}', space=vmem, size = 0x1000, scoped, tag = 'output window, operand 0, single buffered']
    #allocation8 [shape = 'u8[4096]{0}', space=vmem, size = 0x1000, scoped, tag = 'output window, operand 1, single buffered']
    #allocation9 [shape = 's32[1]{0}', space=sflag, size = 0x4, scoped, tag = 'scoped memory for _mlp_forward_padded.1']
    %12 = vsyncpa [#allocation3], 0
    %13 = vsyncpa [#allocation6], 0
    %14 = vsyncpa [#allocation4], 0
    %15 = vsyncpa [#allocation9], 0
    // Predicated region
    $region2: #{_mlp_forward_padded.1} parent=1 // pred_check
      _
    $region3: #{_mlp_forward_padded.1} parent=1 // pred_check_branch
      %17 = sbr.rel (0) target = $region5
    $region4: #{_mlp_forward_padded.1} parent=1 // pred_region
      _
    $region5: #{_mlp_forward_padded.1} parent=1 // pred_fallthru
      _
    // Predicated region
    $region6: #{_mlp_forward_padded.1} parent=1 // pred_check
      _
    $region7: #{_mlp_forward_padded.1} parent=1 // pred_check_branch
      %19 = sbr.rel (0) target = $region9
    $region8: #{_mlp_forward_padded.1} parent=1 // pred_region
      %s21 = ssub.s32 2048, 2048
      %22 = vsyncadd [#allocation3], %s21
      %s23 = sshll.u32 [#allocation2], 4
      %s24 = int_to_ptr.vmem [resolvable:$true] %s23
      %29 = dma.hbm_to_vmem [thread:$0]  %s1, 2048, %s24, [#allocation3], 128, 128, 8
    $region9: #{_mlp_forward_padded.1} parent=1 // pred_fallthru
      _
    // Predicated region
    $region10: #{_mlp_forward_padded.1} parent=1 // pred_check
      _
    $region11: #{_mlp_forward_padded.1} parent=1 // pred_check_branch
      %31 = sbr.rel (0) target = $region13
    $region12: #{_mlp_forward_padded.1} parent=1 // pred_region
      _
    $region13: #{_mlp_forward_padded.1} parent=1 // pred_fallthru
      _
    // Predicated region
    $region14: #{_mlp_forward_padded.1} parent=1 // pred_check
      _
    $region15: #{_mlp_forward_padded.1} parent=1 // pred_check_branch
      %33 = sbr.rel (0) target = $region17
    $region16: #{_mlp_forward_padded.1} parent=1 // pred_region
      %s35 = ssub.s32 2048, 2048
      %36 = vsyncadd [#allocation6], %s35
      %s37 = sshll.u32 [#allocation5], 4
      %s38 = int_to_ptr.vmem [resolvable:$true] %s37
      %43 = dma.hbm_to_vmem [thread:$0]  %s3, 2048, %s38, [#allocation6], 128, 128, 8
    $region17: #{_mlp_forward_padded.1} parent=1 // pred_fallthru
      _
    // Predicated region
    $region18: #{_mlp_forward_padded.1} parent=1 // pred_check
      _
    $region19: #{_mlp_forward_padded.1} parent=1 // pred_check_branch
      %45 = sbr.rel (0) target = $region21
    $region20: #{_mlp_forward_padded.1} parent=1 // pred_region
      _
    $region21: #{_mlp_forward_padded.1} parent=1 // pred_fallthru
      _
    // Predicated region
    $region22: #{_mlp_forward_padded.1} parent=1 // pred_check
      _
    $region23: #{_mlp_forward_padded.1} parent=1 // pred_check_branch
      %47 = sbr.rel (0) target = $region25
    $region24: #{_mlp_forward_padded.1} parent=1 // pred_region
      %48 = dma.done [#allocation3], 2048
    $region25: #{_mlp_forward_padded.1} parent=1 // pred_fallthru
      _
    // Predicated region
    $region26: #{_mlp_forward_padded.1} parent=1 // pred_check
      _
    $region27: #{_mlp_forward_padded.1} parent=1 // pred_check_branch
      %50 = sbr.rel (0) target = $region29
    $region28: #{_mlp_forward_padded.1} parent=1 // pred_region
      %51 = dma.done [#allocation6], 2048
    $region29: #{_mlp_forward_padded.1} parent=1 // pred_fallthru
      _
    %v52 = vld [vmem:[%s0] sm:$0xff]
    %v53 = vld [vmem:[#allocation2] sm:$0xff]
    %v54 = vld [vmem:[#allocation2 + $0x8] sm:$0xff]
    %v55 = vld [vmem:[#allocation2 + $0x10] sm:$0xff]
    %v56 = vld [vmem:[#allocation2 + $0x18] sm:$0xff]
    %v57 = vld [vmem:[#allocation2 + $0x20] sm:$0xff]
    %v58 = vld [vmem:[#allocation2 + $0x28] sm:$0xff]
    %v59 = vld [vmem:[#allocation2 + $0x30] sm:$0xff]
    %v60 = vld [vmem:[#allocation2 + $0x38] sm:$0xff]
    %v61 = vld [vmem:[#allocation2 + $0x40] sm:$0xff]
    %v62 = vld [vmem:[#allocation2 + $0x48] sm:$0xff]
    %v63 = vld [vmem:[#allocation2 + $0x50] sm:$0xff]
    %v64 = vld [vmem:[#allocation2 + $0x58] sm:$0xff]
    %v65 = vld [vmem:[#allocation2 + $0x60] sm:$0xff]
    %v66 = vld [vmem:[#allocation2 + $0x68] sm:$0xff]
    %v67 = vld [vmem:[#allocation2 + $0x70] sm:$0xff]
    %v68 = vld [vmem:[#allocation2 + $0x78] sm:$0xff]
    %v69 = vld [vmem:[%s2] sm:$0x1]
    %v71 = vlaneseq
    %v72 = vshrl.u32 %v71, 7
    %v73 = vsub.s32 0, %v72
    %v74 = vrot.slane %v69, %v73
    %76 = vmatprep.subr.mxu0 0.0
    %77 = vmatpush1.msra.mxu0 %v53
    %78 = vmatprep.subr.mxu0 0.0
    %79 = vmatpush1.msra.mxu0 %v54
    %80 = vmatprep.subr.mxu0 0.0
    %81 = vmatpush1.msra.mxu0 %v55
    %82 = vmatprep.subr.mxu0 0.0
    %83 = vmatpush1.msra.mxu0 %v56
    %84 = vmatprep.subr.mxu0 0.0
    %85 = vmatpush1.msra.mxu0 %v57
    %86 = vmatprep.subr.mxu0 0.0
    %87 = vmatpush1.msra.mxu0 %v58
    %88 = vmatprep.subr.mxu0 0.0
    %89 = vmatpush1.msra.mxu0 %v59
    %90 = vmatprep.subr.mxu0 0.0
    %91 = vmatpush1.msra.mxu0 %v60
    %92 = vmatprep.subr.mxu0 0.0
    %93 = vmatpush1.msra.mxu0 %v61
    %94 = vmatprep.subr.mxu0 0.0
    %95 = vmatpush1.msra.mxu0 %v62
    %96 = vmatprep.subr.mxu0 0.0
    %97 = vmatpush1.msra.mxu0 %v63
    %98 = vmatprep.subr.mxu0 0.0
    %99 = vmatpush1.msra.mxu0 %v64
    %100 = vmatprep.subr.mxu0 0.0
    %101 = vmatpush1.msra.mxu0 %v65
    %102 = vmatprep.subr.mxu0 0.0
    %103 = vmatpush1.msra.mxu0 %v66
    %104 = vmatprep.subr.mxu0 0.0
    %105 = vmatpush1.msra.mxu0 %v67
    %106 = vmatprep.subr.mxu0 0.0
    %107 = vmatpush1.msra.mxu0 %v68
    %108 = vmatprep.subr.mxu0 0.0
    %109 = vmatpush1.msra.mxu0 0.0
    %110 = vmatprep.subr.mxu0 0.0
    %111 = vmatpush1.msra.mxu0 0.0
    %112 = vmatprep.subr.mxu0 0.0
    %113 = vmatpush1.msra.mxu0 0.0
    %114 = vmatprep.subr.mxu0 0.0
    %115 = vmatpush1.msra.mxu0 0.0
    %116 = vmatprep.subr.mxu0 0.0
    %117 = vmatpush1.msra.mxu0 0.0
    %118 = vmatprep.subr.mxu0 0.0
    %119 = vmatpush1.msra.mxu0 0.0
    %120 = vmatprep.subr.mxu0 0.0
    %121 = vmatpush1.msra.mxu0 0.0
    %122 = vmatprep.subr.mxu0 0.0
    %123 = vmatpush1.msra.mxu0 0.0
    %124 = vmatprep.subr.mxu0 0.0
    %125 = vmatpush1.msra.mxu0 0.0
    %126 = vmatprep.subr.mxu0 0.0
    %127 = vmatpush1.msra.mxu0 0.0
    %128 = vmatprep.subr.mxu0 0.0
    %129 = vmatpush1.msra.mxu0 0.0
    %130 = vmatprep.subr.mxu0 0.0
    %131 = vmatpush1.msra.mxu0 0.0
    %132 = vmatprep.subr.mxu0 0.0
    %133 = vmatpush1.msra.mxu0 0.0
    %134 = vmatprep.subr.mxu0 0.0
    %135 = vmatpush1.msra.mxu0 0.0
    %136 = vmatprep.subr.mxu0 0.0
    %137 = vmatpush1.msra.mxu0 0.0
    %138 = vmatprep.subr.mxu0 0.0
    %139 = vmatpush1.msra.mxu0 0.0
    %140 = vmatprep.mubr.f32.mxu0 0.0
    %141 = vmatmul.mubr.f32.gmra.mrb[0].mxu0 %v52
    %v142 = vpop.f32.mrb[0].mxu0
    %v143 = vadd.f32 %v74, %v142
    %v144 = vpop.f32.mrb[0].mxu0
    %145 = vdwg.mxu0
    %v146 = vmax.f32 %v143, 0.0
    %147 = vst [vmem:[#allocation8] sm:$0xff] %v146
    %v148 = vld [vmem:[#allocation5] sm:$0xff]
    %v149 = vld [vmem:[#allocation5 + $0x8] sm:$0xff]
    %v150 = vld [vmem:[#allocation5 + $0x10] sm:$0xff]
    %v151 = vld [vmem:[#allocation5 + $0x18] sm:$0xff]
    %v152 = vld [vmem:[#allocation5 + $0x20] sm:$0xff]
    %v153 = vld [vmem:[#allocation5 + $0x28] sm:$0xff]
    %v154 = vld [vmem:[#allocation5 + $0x30] sm:$0xff]
    %v155 = vld [vmem:[#allocation5 + $0x38] sm:$0xff]
    %v156 = vld [vmem:[#allocation5 + $0x40] sm:$0xff]
    %v157 = vld [vmem:[#allocation5 + $0x48] sm:$0xff]
    %v158 = vld [vmem:[#allocation5 + $0x50] sm:$0xff]
    %v159 = vld [vmem:[#allocation5 + $0x58] sm:$0xff]
    %v160 = vld [vmem:[#allocation5 + $0x60] sm:$0xff]
    %v161 = vld [vmem:[#allocation5 + $0x68] sm:$0xff]
    %v162 = vld [vmem:[#allocation5 + $0x70] sm:$0xff]
    %v163 = vld [vmem:[#allocation5 + $0x78] sm:$0xff]
    %v164 = vld [vmem:[%s4] sm:$0x1]
    %v166 = vlaneseq
    %v167 = vshrl.u32 %v166, 7
    %v168 = vsub.s32 0, %v167
    %v169 = vrot.slane %v164, %v168
    %171 = vmatprep.subr.mxu0 0.0
    %172 = vmatpush1.msra.mxu0 %v148
    %173 = vmatprep.subr.mxu0 0.0
    %174 = vmatpush1.msra.mxu0 %v149
    %175 = vmatprep.subr.mxu0 0.0
    %176 = vmatpush1.msra.mxu0 %v150
    %177 = vmatprep.subr.mxu0 0.0
    %178 = vmatpush1.msra.mxu0 %v151
    %179 = vmatprep.subr.mxu0 0.0
    %180 = vmatpush1.msra.mxu0 %v152
    %181 = vmatprep.subr.mxu0 0.0
    %182 = vmatpush1.msra.mxu0 %v153
    %183 = vmatprep.subr.mxu0 0.0
    %184 = vmatpush1.msra.mxu0 %v154
    %185 = vmatprep.subr.mxu0 0.0
    %186 = vmatpush1.msra.mxu0 %v155
    %187 = vmatprep.subr.mxu0 0.0
    %188 = vmatpush1.msra.mxu0 %v156
    %189 = vmatprep.subr.mxu0 0.0
    %190 = vmatpush1.msra.mxu0 %v157
    %191 = vmatprep.subr.mxu0 0.0
    %192 = vmatpush1.msra.mxu0 %v158
    %193 = vmatprep.subr.mxu0 0.0
    %194 = vmatpush1.msra.mxu0 %v159
    %195 = vmatprep.subr.mxu0 0.0
    %196 = vmatpush1.msra.mxu0 %v160
    %197 = vmatprep.subr.mxu0 0.0
    %198 = vmatpush1.msra.mxu0 %v161
    %199 = vmatprep.subr.mxu0 0.0
    %200 = vmatpush1.msra.mxu0 %v162
    %201 = vmatprep.subr.mxu0 0.0
    %202 = vmatpush1.msra.mxu0 %v163
    %203 = vmatprep.subr.mxu0 0.0
    %204 = vmatpush1.msra.mxu0 0.0
    %205 = vmatprep.subr.mxu0 0.0
    %206 = vmatpush1.msra.mxu0 0.0
    %207 = vmatprep.subr.mxu0 0.0
    %208 = vmatpush1.msra.mxu0 0.0
    %209 = vmatprep.subr.mxu0 0.0
    %210 = vmatpush1.msra.mxu0 0.0
    %211 = vmatprep.subr.mxu0 0.0
    %212 = vmatpush1.msra.mxu0 0.0
    %213 = vmatprep.subr.mxu0 0.0
    %214 = vmatpush1.msra.mxu0 0.0
    %215 = vmatprep.subr.mxu0 0.0
    %216 = vmatpush1.msra.mxu0 0.0
    %217 = vmatprep.subr.mxu0 0.0
    %218 = vmatpush1.msra.mxu0 0.0
    %219 = vmatprep.subr.mxu0 0.0
    %220 = vmatpush1.msra.mxu0 0.0
    %221 = vmatprep.subr.mxu0 0.0
    %222 = vmatpush1.msra.mxu0 0.0
    %223 = vmatprep.subr.mxu0 0.0
    %224 = vmatpush1.msra.mxu0 0.0
    %225 = vmatprep.subr.mxu0 0.0
    %226 = vmatpush1.msra.mxu0 0.0
    %227 = vmatprep.subr.mxu0 0.0
    %228 = vmatpush1.msra.mxu0 0.0
    %229 = vmatprep.subr.mxu0 0.0
    %230 = vmatpush1.msra.mxu0 0.0
    %231 = vmatprep.subr.mxu0 0.0
    %232 = vmatpush1.msra.mxu0 0.0
    %233 = vmatprep.subr.mxu0 0.0
    %234 = vmatpush1.msra.mxu0 0.0
    %235 = vmatprep.mubr.f32.mxu0 0.0
    %236 = vmatmul.mubr.f32.gmra.mrb[0].mxu0 %v146
    %v237 = vpop.f32.mrb[0].mxu0
    %v238 = vadd.f32 %v169, %v237
    %v239 = vpop.f32.mrb[0].mxu0
    %240 = vdwg.mxu0
    %241 = vst [vmem:[#allocation7] sm:$0xff] %v238
    // Predicated region
    $region30: #{_mlp_forward_padded.1} parent=1 // pred_check
      _
    $region31: #{_mlp_forward_padded.1} parent=1 // pred_check_branch
      %243 = sbr.rel (0) target = $region33
    $region32: #{_mlp_forward_padded.1} parent=1 // pred_region
      %s245 = ssub.s32 128, 128
      %246 = vsyncadd [#allocation4], %s245
      %s248 = sshll.u32 [#allocation7], 4
      %s249 = int_to_ptr.vmem [resolvable:$true] %s248
      %251 = dma.vmem_to_hbm [thread:$0]  %s249, 128, %s5, [#allocation4]
    $region33: #{_mlp_forward_padded.1} parent=1 // pred_fallthru
      _
    // Predicated region
    $region34: #{_mlp_forward_padded.1} parent=1 // pred_check
      _
    $region35: #{_mlp_forward_padded.1} parent=1 // pred_check_branch
      %253 = sbr.rel (0) target = $region37
    $region36: #{_mlp_forward_padded.1} parent=1 // pred_region
      %s255 = ssub.s32 128, 128
      %256 = vsyncadd [#allocation9], %s255
      %s258 = sshll.u32 [#allocation8], 4
      %s259 = int_to_ptr.vmem [resolvable:$true] %s258
      %261 = dma.vmem_to_hbm [thread:$0]  %s259, 128, %s6, [#allocation9]
    $region37: #{_mlp_forward_padded.1} parent=1 // pred_fallthru
      _
    // Predicated region
    $region38: #{_mlp_forward_padded.1} parent=1 // pred_check
      _
    $region39: #{_mlp_forward_padded.1} parent=1 // pred_check_branch
      %263 = sbr.rel (0) target = $region41
    $region40: #{_mlp_forward_padded.1} parent=1 // pred_region
      %264 = dma.done [#allocation4], 128
    $region41: #{_mlp_forward_padded.1} parent=1 // pred_fallthru
      _
    // Predicated region
    $region42: #{_mlp_forward_padded.1} parent=1 // pred_check
      _
    $region43: #{_mlp_forward_padded.1} parent=1 // pred_check_branch
      %266 = sbr.rel (0) target = $region45
    $region44: #{_mlp_forward_padded.1} parent=1 // pred_region
      %267 = dma.done [#allocation9], 128
    $region45: #{_mlp_forward_padded.1} parent=1 // pred_fallthru
      _
    %268 = vsyncpa [#allocation3], 1
    %269 = vsyncpa [#allocation6], 1
    %270 = vsyncpa [#allocation4], 1
    %271 = vsyncpa [#allocation9], 1

</llo_original>
